<compile_context>
chip_gen: v5e
topology: v5e:2x2
jax: 0.10.0
libtpu: 0.0.40
codegen_flags: <defaults>
</compile_context>

<pallas_src>
import jax
import jax.numpy as jnp
import numpy as np
from jax.experimental import pallas as pl
from jax.experimental.pallas import tpu as pltpu


# ---------------------------------------------------------------------------
# Kernels
# ---------------------------------------------------------------------------
def _matmul_kernel(a_ref, b_ref, o_ref, acc_ref):
    """Tiled o = a @ b over grid (rows, K); bf16 operands, f32 accumulation."""
    @pl.when(pl.program_id(1) == 0)
    def _():
        acc_ref[...] = jnp.zeros_like(acc_ref)

    acc_ref[...] += jnp.dot(a_ref[...], b_ref[...],
                            preferred_element_type=jnp.float32)

    @pl.when(pl.program_id(1) == pl.num_programs(1) - 1)
    def _():
        o_ref[...] = acc_ref[...].astype(o_ref.dtype)


def _prop_step_kernel(a_ref, x_ref, pc_ref, bias_ref, o_ref, acc_ref):
    """One message-passing step: o = relu((a @ x) @ p_node_conv + bias)."""
    @pl.when(pl.program_id(1) == 0)
    def _():
        acc_ref[...] = jnp.zeros_like(acc_ref)

    acc_ref[...] += jnp.dot(a_ref[...], x_ref[...],
                            preferred_element_type=jnp.float32)

    @pl.when(pl.program_id(1) == pl.num_programs(1) - 1)
    def _():
        part1 = jnp.dot(acc_ref[...].astype(jnp.bfloat16), pc_ref[...],
                        preferred_element_type=jnp.float32)
        o_ref[...] = jnp.maximum(part1 + bias_ref[...], 0.0).astype(o_ref.dtype)


def _readout_kernel(x_ref, b_ref, ypot_ref, h1t_ref, h1b_ref, h2_ref, q_ref):
    """q = relu(X @ h1_top + (B @ y_pot) @ h1_bot) @ h2, row-parallel."""
    f32, bf16 = jnp.float32, jnp.bfloat16
    rep_y = jnp.dot(b_ref[...], ypot_ref[...], preferred_element_type=f32)
    hidden = (jnp.dot(x_ref[...], h1t_ref[...], preferred_element_type=f32)
              + jnp.dot(rep_y.astype(bf16), h1b_ref[...],
                        preferred_element_type=f32))
    hidden = jnp.maximum(hidden, 0.0)
    q_ref[...] = jnp.dot(hidden.astype(bf16), h2_ref[...],
                         preferred_element_type=f32)


# ---------------------------------------------------------------------------
# Wrapper helpers
# ---------------------------------------------------------------------------
def _round_up(v, m):
    return ((v + m - 1) // m) * m


def _pad_to(a, shape):
    return jnp.pad(a, [(0, s - d) for d, s in zip(a.shape, shape)])


def _tile_size():
    # v6e/v7x MXUs are 2x256x256 -> 256 tiles; v5e and older are 128-wide.
    kind = jax.devices()[0].device_kind.lower()
    if any(t in kind for t in ("v2", "v3", "v4", "v5")):
        return 128
    return 256


def _vmem_limit(bytes_needed):
    # Generation-aware cap: physical VMEM minus headroom (v5e/v6e: 128 MiB,
    # v7x: 64 MiB); never below the 32 MiB default scoped limit.
    try:
        cap = int(pltpu.get_tpu_info().vmem_capacity_bytes)
    except Exception:  # conservative fallback, safe on every generation
        cap = 64 << 20
    return int(max(32 << 20, min(int(bytes_needed) + (8 << 20), cap - (16 << 20))))


def _tiled_matmul(a, b, tm, tk, out_dtype):
    """a [M, K] @ b [K, N] via grid (M//tm, K//tk); N kept as one lane block."""
    M, K = a.shape
    _, N = b.shape
    block_bytes = (tm * tk * a.dtype.itemsize + tk * N * b.dtype.itemsize
                   + tm * N * jnp.dtype(out_dtype).itemsize)
    scratch_bytes = tm * N * 4
    cost = pl.CostEstimate(
        flops=int(2 * M * K * N), transcendentals=0,
        bytes_accessed=int(a.size * a.dtype.itemsize
                           + b.size * b.dtype.itemsize
                           + M * N * jnp.dtype(out_dtype).itemsize))
    return pl.pallas_call(
        _matmul_kernel,
        out_shape=jax.ShapeDtypeStruct((M, N), out_dtype),
        grid=(M // tm, K // tk),
        in_specs=[pl.BlockSpec((tm, tk), lambda i, k: (i, k)),
                  pl.BlockSpec((tk, N), lambda i, k: (k, 0))],
        out_specs=pl.BlockSpec((tm, N), lambda i, k: (i, 0)),
        scratch_shapes=[pltpu.VMEM((tm, N), jnp.float32)],
        compiler_params=pltpu.CompilerParams(
            dimension_semantics=("parallel", "arbitrary"),
            vmem_limit_bytes=_vmem_limit(2 * block_bytes + scratch_bytes)),
        cost_estimate=cost,
    )(a, b)


def _prop_step(a, x, pc, bias, tm, tk):
    """relu((a @ x) @ pc + bias); a [M,K] bf16, x [K,D] bf16, bias [M,D] f32."""
    M, K = a.shape
    _, D = x.shape
    block_bytes = (tm * tk * 2 + tk * D * 2 + D * D * 2 + tm * D * 4 + tm * D * 2)
    scratch_bytes = tm * D * 4
    cost = pl.CostEstimate(
        flops=int(2 * M * K * D + 2 * M * D * D), transcendentals=0,
        bytes_accessed=int((a.size + x.size + pc.size) * 2
                           + bias.size * 4 + M * D * 2))
    return pl.pallas_call(
        _prop_step_kernel,
        out_shape=jax.ShapeDtypeStruct((M, D), jnp.bfloat16),
        grid=(M // tm, K // tk),
        in_specs=[pl.BlockSpec((tm, tk), lambda i, k: (i, k)),
                  pl.BlockSpec((tk, D), lambda i, k: (k, 0)),
                  pl.BlockSpec((D, D), lambda i, k: (0, 0)),
                  pl.BlockSpec((tm, D), lambda i, k: (i, 0))],
        out_specs=pl.BlockSpec((tm, D), lambda i, k: (i, 0)),
        scratch_shapes=[pltpu.VMEM((tm, D), jnp.float32)],
        compiler_params=pltpu.CompilerParams(
            dimension_semantics=("parallel", "arbitrary"),
            vmem_limit_bytes=_vmem_limit(2 * block_bytes + scratch_bytes)),
        cost_estimate=cost,
    )(a, x, pc, bias)


def _readout(x, b, ypot, h1t, h1b, h2, tm, qp):
    M, D = x.shape
    _, G = b.shape
    H = h1t.shape[1]
    block_bytes = (tm * D * 2 + tm * G * 2 + G * D * 2 + 2 * D * H * 2
                   + H * qp * 2 + tm * qp * 4)
    return pl.pallas_call(
        _readout_kernel,
        out_shape=jax.ShapeDtypeStruct((M, qp), jnp.float32),
        grid=(M // tm,),
        in_specs=[pl.BlockSpec((tm, D), lambda i: (i, 0)),
                  pl.BlockSpec((tm, G), lambda i: (i, 0)),
                  pl.BlockSpec((G, D), lambda i: (0, 0)),
                  pl.BlockSpec((D, H), lambda i: (0, 0)),
                  pl.BlockSpec((D, H), lambda i: (0, 0)),
                  pl.BlockSpec((H, qp), lambda i: (0, 0))],
        out_specs=pl.BlockSpec((tm, qp), lambda i: (i, 0)),
        compiler_params=pltpu.CompilerParams(
            dimension_semantics=("parallel",),
            vmem_limit_bytes=_vmem_limit(2 * block_bytes)),
    )(x, b, ypot, h1t, h1b, h2)


# ---------------------------------------------------------------------------
# Forward pass
# ---------------------------------------------------------------------------
def hyper_s2v_dqn_forward(x, edge_weight, vertex, edges, batch, params,
                          *, T, num_edges, num_graphs):
    f32, bf16 = jnp.float32, jnp.bfloat16
    N, _ = x.shape
    D = params["w_n2l"].shape[1]
    H = params["h1_weight"].shape[1]

    TILE = _tile_size()
    LANE = 128
    Np = _round_up(N, TILE)
    Ep = _round_up(num_edges, TILE)
    Gp = _round_up(num_graphs, LANE)
    Dp = _round_up(D, LANE)
    Hp = _round_up(H, LANE)
    Qp = LANE                         # padded q head -> unmasked lane-dense vst

    # ---- Graph structure + one-time (not T-multiplied) precompute, f32 XLA ----
    # Incidence matrix A[n, e] = #pairs with (vertex == n, edges == e);
    # one-hot graph membership B[n, g] = (batch[n] == g).
    A = jax.ops.segment_sum(jax.nn.one_hot(edges, num_edges, dtype=f32),
                            vertex, num_segments=N)                    # [N, E]
    B = jax.nn.one_hot(batch, num_graphs, dtype=f32)                   # [N, G]

    X0 = jax.nn.relu(x.astype(f32) @ params["w_n2l"])                  # [N, D]
    edge_scatter = jax.ops.segment_sum(
        jax.nn.relu(edge_weight.astype(f32) @ params["w_e2l"]),
        vertex, num_segments=N)                                        # [N, D]
    bias = (edge_scatter @ params["trans_node_1"]
            + x[:, -1:].astype(f32) @ params["trans_node_2"])          # [N, D]

    # ---- Pad to tile-dense shapes; MXU operands in bf16 ----
    X_p = _pad_to(X0, (Np, Dp)).astype(bf16)
    bias_p = _pad_to(bias, (Np, Dp))                                   # f32
    B_p = _pad_to(B, (Np, Gp)).astype(bf16)
    Bt_p = _pad_to(B.T, (Gp, Np)).astype(bf16)
    pc_p = _pad_to(params["p_node_conv"], (Dp, Dp)).astype(bf16)
    h1 = params["h1_weight"]
    h1t_p = _pad_to(h1[:D, :], (Dp, Hp)).astype(bf16)
    h1b_p = _pad_to(h1[D:2 * D, :], (Dp, Hp)).astype(bf16)
    h2_p = _pad_to(params["h2_weight"], (Hp, Qp)).astype(bf16)

    # ---- Dense vs. factored propagation operator ----
    # Dense P = A A^T costs Np^2*Dp/step and Np*Np operator bytes; factored
    # A (A^T X) costs 2*Np*Ep*Dp/step and 2*Np*Ep bytes.  Densify only when the
    # edge axis is at least half the node axis AND P stays bf16-exact (<=256).
    use_dense = Ep >= Np // 2
    P_p = A_bf = At_bf = None
    if use_dense:
        P = A @ A.T
        try:
            if float(jnp.max(P)) > 256.0:
                use_dense = False
        except Exception:   # under jit we cannot concretize; keep heuristic
            pass
    if use_dense:
        P_p = _pad_to(P, (Np, Np)).astype(bf16)      # small integer counts
    else:
        A_bf = _pad_to(A, (Np, Ep)).astype(bf16)
        At_bf = _pad_to(A.T, (Ep, Np)).astype(bf16)  # no in-kernel transpose

    tm = tk = TILE

    # ---- T message-passing steps: per-step tiled pallas_calls ----
    for _ in range(T):
        if use_dense:
            X_p = _prop_step(P_p, X_p, pc_p, bias_p, tm, tk)
        else:
            Xe = _tiled_matmul(At_bf, X_p, TILE, tk, bf16)     # [Ep, Dp] = A^T X
            X_p = _prop_step(A_bf, Xe, pc_p, bias_p, tm, tk)   # A Xe -> update

    # ---- Readout: y_pot = B^T X, then fused rep_y / h1 / h2 per row tile ----
    ypot = _tiled_matmul(Bt_p, X_p, LANE, tk, bf16)            # [Gp, Dp]
    q_slab = _readout(X_p, B_p, ypot, h1t_p, h1b_p, h2_p, tm, Qp)
    return q_slab[:N, 0:1]


# ---------------------------------------------------------------------------
# Pure-JAX f32 reference (independent formulation via segment_sum)
# ---------------------------------------------------------------------------
def _reference(x, edge_weight, vertex, edges, batch, p, *, T, num_edges, num_graphs):
    N = x.shape[0]
    state = x[:, -1:]
    X = jax.nn.relu(x @ p["w_n2l"])
    edge_attr = edge_weight @ p["w_e2l"]
    state_attr = state @ p["trans_node_2"]
    for _ in range(T):
        Xve = X[vertex]
        Xe = jax.ops.segment_sum(Xve, edges, num_segments=num_edges)
        Xev = Xe[edges]
        Xv = jax.ops.segment_sum(Xev, vertex, num_segments=N)
        part1 = Xv @ p["p_node_conv"]
        edge_rep = jax.nn.relu(edge_attr)
        part2 = jax.ops.segment_sum(edge_rep, vertex, num_segments=N) @ p["trans_node_1"]
        X = jax.nn.relu(part1 + part2 + state_attr)
    y_pot = jax.ops.segment_sum(X, batch, num_segments=num_graphs)
    rep_y = y_pot[batch]
    cat = jnp.concatenate([X, rep_y], axis=-1)
    hidden = jax.nn.relu(cat @ p["h1_weight"])
    return hidden @ p["h2_weight"]


def _init_params(key, node_dim, edge_dim, embed_dim, reg_hidden, w_scale):
    ks = jax.random.split(key, 7)
    n = lambda k, shape: (w_scale * jax.random.normal(k, shape, jnp.float32))
    return {
        "w_n2l": n(ks[0], (node_dim, embed_dim)),
        "w_e2l": n(ks[1], (edge_dim, embed_dim)),
        "p_node_conv": n(ks[2], (embed_dim, embed_dim)),
        "trans_node_1": n(ks[3], (embed_dim, embed_dim)),
        "trans_node_2": n(ks[4], (1, embed_dim)),
        "h1_weight": n(ks[5], (2 * embed_dim, reg_hidden)),
        "h2_weight": n(ks[6], (reg_hidden, 1)),
    }


if __name__ == "__main__":
    # Module hyperparameters (matching the PyTorch __init__ docstring).
    node_dim, edge_dim = 2, 4
    embed_dim, reg_hidden = 32, 32
    T, w_scale = 3, 0.01

    # Small synthetic hypergraph: N nodes, M incidence pairs, E hyperedges, G graphs.
    N, M, E_num, G = 8, 16, 4, 2

    key = jax.random.PRNGKey(0)
    k_x, k_ew, k_v, k_e, k_p = jax.random.split(key, 5)

    x = jax.random.normal(k_x, (N, node_dim), jnp.float32)
    edge_weight = jax.random.normal(k_ew, (M, edge_dim), jnp.float32)
    vertex = jax.random.randint(k_v, (M,), 0, N, dtype=jnp.int32)
    edges = jax.random.randint(k_e, (M,), 0, E_num, dtype=jnp.int32)
    batch = jnp.concatenate(
        [jnp.zeros((N // 2,), jnp.int32), jnp.ones((N - N // 2,), jnp.int32)])

    params = _init_params(k_p, node_dim, edge_dim, embed_dim, reg_hidden, w_scale)

    q = hyper_s2v_dqn_forward(x, edge_weight, vertex, edges, batch, params,
                              T=T, num_edges=E_num, num_graphs=G)
    q = jax.block_until_ready(q)

    q_ref = _reference(x, edge_weight, vertex, edges, batch, params,
                       T=T, num_edges=E_num, num_graphs=G)
    assert q.shape == (N, 1)
    # bf16 MXU operands / bf16-carried X -> tolerance relaxed vs. f32 reference.
    np.testing.assert_allclose(np.asarray(q), np.asarray(q_ref),
                               rtol=1e-1, atol=2e-5)

    print("KERNEL_OK")
</pallas_src>

<mosaic_0001>
module attributes {stable_mosaic.version = 11 : i64} {
  func.func @_prop_step_kernel(%arg0: i32, %arg1: i32, %arg2: memref<256x256xbf16, #tpu.memory_space<vmem>>, %arg3: memref<256x128xbf16, #tpu.memory_space<vmem>>, %arg4: memref<128x128xbf16, #tpu.memory_space<vmem>>, %arg5: memref<256x128xf32, #tpu.memory_space<vmem>>, %arg6: memref<256x128xbf16, #tpu.memory_space<vmem>>, %arg7: memref<256x128xf32, #tpu.memory_space<vmem>>) attributes {dimension_semantics = [#tpu.dimension_semantics<parallel>, #tpu.dimension_semantics<arbitrary>], iteration_bounds = array<i64: 1, 1>, scalar_prefetch = 0 : i64, scratch_operands = 1 : i64, tpu.core_type = #tpu.core_type<tc>, window_params = [{transform_indices = @transform_0, window_bounds = array<i64: 256, 256>}, {transform_indices = @transform_1, window_bounds = array<i64: 256, 128>}, {pipeline_mode = #tpu.pipeline_mode<synchronous>, transform_indices = @transform_2, window_bounds = array<i64: 128, 128>}, {transform_indices = @transform_3, window_bounds = array<i64: 256, 128>}, {transform_indices = @transform_4, window_bounds = array<i64: 256, 128>}]} {
    %c0_i32 = arith.constant 0 : i32
    %0 = arith.cmpi eq, %arg1, %c0_i32 : i32
    %1 = arith.extui %0 : i1 to i32
    %c0_i32_0 = arith.constant 0 : i32
    %2 = arith.cmpi ne, %1, %c0_i32_0 : i32
    scf.if %2 {
      %cst_10 = arith.constant 0.000000e+00 : f32
      %12 = vector.broadcast %cst_10 : f32 to vector<256x128xf32>
      %c0_11 = arith.constant 0 : index
      %c0_12 = arith.constant 0 : index
      %13 = vector.load %arg7[%c0_11, %c0_12] : memref<256x128xf32, #tpu.memory_space<vmem>>, vector<256x128xf32>
      tpu.vector_store %arg7[%c0_11, %c0_12], %12 {strides = array<i32>} : memref<256x128xf32, #tpu.memory_space<vmem>>, vector<256x128xf32>,
    } else {
    }
    %c0 = arith.constant 0 : index
    %c0_1 = arith.constant 0 : index
    %3 = vector.load %arg7[%c0, %c0_1] : memref<256x128xf32, #tpu.memory_space<vmem>>, vector<256x128xf32>
    %c0_2 = arith.constant 0 : index
    %c0_3 = arith.constant 0 : index
    %4 = vector.load %arg2[%c0_2, %c0_3] : memref<256x256xbf16, #tpu.memory_space<vmem>>, vector<256x256xbf16>
    %c0_4 = arith.constant 0 : index
    %c0_5 = arith.constant 0 : index
    %5 = vector.load %arg3[%c0_4, %c0_5] : memref<256x128xbf16, #tpu.memory_space<vmem>>, vector<256x128xbf16>
    %cst = arith.constant dense<0.000000e+00> : vector<256x128xf32>
    %6 = tpu.matmul %4, %5, %cst {dimension_numbers = #tpu.dot_dimension_numbers<[1], [0], [0], [1], [0, 0, 1, 1], [], []>} : vector<256x256xbf16>, vector<256x128xbf16>, vector<256x128xf32> -> vector<256x128xf32>
    %7 = arith.addf %3, %6 : vector<256x128xf32>
    %c0_6 = arith.constant 0 : index
    %c0_7 = arith.constant 0 : index
    %8 = vector.load %arg7[%c0_6, %c0_7] : memref<256x128xf32, #tpu.memory_space<vmem>>, vector<256x128xf32>
    tpu.vector_store %arg7[%c0_6, %c0_7], %7 {strides = array<i32>} : memref<256x128xf32, #tpu.memory_space<vmem>>, vector<256x128xf32>,
    %c0_i32_8 = arith.constant 0 : i32
    %9 = arith.cmpi eq, %arg1, %c0_i32_8 : i32
    %10 = arith.extui %9 : i1 to i32
    %c0_i32_9 = arith.constant 0 : i32
    %11 = arith.cmpi ne, %10, %c0_i32_9 : i32
    scf.if %11 {
      %c0_10 = arith.constant 0 : index
      %c0_11 = arith.constant 0 : index
      %12 = vector.load %arg7[%c0_10, %c0_11] : memref<256x128xf32, #tpu.memory_space<vmem>>, vector<256x128xf32>
      %13 = arith.truncf %12 : vector<256x128xf32> to vector<256x128xbf16>
      %c0_12 = arith.constant 0 : index
      %c0_13 = arith.constant 0 : index
      %14 = vector.load %arg4[%c0_12, %c0_13] : memref<128x128xbf16, #tpu.memory_space<vmem>>, vector<128x128xbf16>
      %cst_14 = arith.constant dense<0.000000e+00> : vector<256x128xf32>
      %15 = tpu.matmul %13, %14, %cst_14 {dimension_numbers = #tpu.dot_dimension_numbers<[1], [0], [0], [1], [0, 0, 1, 1], [], []>} : vector<256x128xbf16>, vector<128x128xbf16>, vector<256x128xf32> -> vector<256x128xf32>
      %c0_15 = arith.constant 0 : index
      %c0_16 = arith.constant 0 : index
      %16 = vector.load %arg5[%c0_15, %c0_16] : memref<256x128xf32, #tpu.memory_space<vmem>>, vector<256x128xf32>
      %17 = arith.addf %15, %16 : vector<256x128xf32>
      %cst_17 = arith.constant 0.000000e+00 : f32
      %18 = vector.broadcast %cst_17 : f32 to vector<256x128xf32>
      %19 = arith.maximumf %17, %18 : vector<256x128xf32>
      %20 = arith.truncf %19 : vector<256x128xf32> to vector<256x128xbf16>
      %c0_18 = arith.constant 0 : index
      %c0_19 = arith.constant 0 : index
      %21 = vector.load %arg6[%c0_18, %c0_19] : memref<256x128xbf16, #tpu.memory_space<vmem>>, vector<256x128xbf16>
      tpu.vector_store %arg6[%c0_18, %c0_19], %20 {strides = array<i32>} : memref<256x128xbf16, #tpu.memory_space<vmem>>, vector<256x128xbf16>,
    } else {
    }
    return
  }
  func.func @transform_0(%arg0: i32, %arg1: i32) -> (i32, i32) {
    %c0_i32 = arith.constant 0 : i32
    return %arg0, %arg1 : i32, i32
  }
  func.func @transform_1(%arg0: i32, %arg1: i32) -> (i32, i32) {
    %c0_i32 = arith.constant 0 : i32
    %c0_i32_0 = arith.constant 0 : i32
    return %arg1, %c0_i32 : i32, i32
  }
  func.func @transform_2(%arg0: i32, %arg1: i32) -> (i32, i32) {
    %c0_i32 = arith.constant 0 : i32
    %c0_i32_0 = arith.constant 0 : i32
    %c0_i32_1 = arith.constant 0 : i32
    return %c0_i32, %c0_i32_0 : i32, i32
  }
  func.func @transform_3(%arg0: i32, %arg1: i32) -> (i32, i32) {
    %c0_i32 = arith.constant 0 : i32
    %c0_i32_0 = arith.constant 0 : i32
    return %arg0, %c0_i32 : i32, i32
  }
  func.func @transform_4(%arg0: i32, %arg1: i32) -> (i32, i32) {
    %c0_i32 = arith.constant 0 : i32
    %c0_i32_0 = arith.constant 0 : i32
    return %arg0, %c0_i32 : i32, i32
  }
}

</mosaic_0001>

<llo_original>
// kernel: tpu_custom_call.1
$region0: #{tpu_custom_call.1}
  #allocation0 [shape = 'u32[]', space=smem, size = 0x4, offset = 0x4, fixed_abs, tag = 'smem constant byte address 0x4 - core index']
  #allocation1 [shape = 'u32[72,128]{1,0:T(1,128)}', space=vmem, size = 0x9000, scoped, tag = 'internal scratch']
  #allocation2 [shape = 'f32[256,128]{1,0:T(8,128)}', space=vmem, size = 0x20000, scoped, tag = 'scratch operand']
  %s0 = inlined_call_operand.hbm [shape: bf16[256,256], index: 0, kind: input, shape index: {}]
  %s1 = inlined_call_operand.hbm [shape: bf16[256,128], index: 1, kind: input, shape index: {}]
  %s2 = inlined_call_operand.hbm [shape: bf16[128,128], index: 2, kind: input, shape index: {}]
  %s3 = inlined_call_operand.hbm [shape: f32[256,128], index: 3, kind: input, shape index: {}]
  %s4 = inlined_call_operand.hbm [shape: bf16[256,128], index: 4, kind: output, shape index: {}]
  %s5 = sld [smem:[#allocation0]]
  $region50: #{tpu_custom_call.1} parent=0
    _
  %s7 = ssub.s32 1, %s5
  %s8 = scalar_select 0, %s7, %s5
  $region1: #{tpu_custom_call.1} parent=0
    #allocation3 [shape = 'u8[131072]{0}', space=vmem, size = 0x20000, scoped, tag = 'input window, operand 0, single buffered']
    #allocation4 [shape = 's32[1]{0}', space=sflag, size = 0x4, scoped, tag = 'scoped memory for tpu_custom_call.1']
    #allocation5 [shape = 's32[1]{0}', space=sflag, size = 0x4, scoped, tag = 'scoped memory for tpu_custom_call.1']
    #allocation6 [shape = 'u8[65536]{0}', space=vmem, size = 0x10000, scoped, tag = 'input window, operand 1, single buffered']
    #allocation7 [shape = 's32[1]{0}', space=sflag, size = 0x4, scoped, tag = 'scoped memory for tpu_custom_call.1']
    #allocation8 [shape = 'u8[32768]{0}', space=vmem, size = 0x8000, scoped, tag = 'input window, operand 2, single buffered']
    #allocation9 [shape = 'u8[131072]{0}', space=vmem, size = 0x20000, scoped, tag = 'input window, operand 3, single buffered']
    #allocation10 [shape = 's32[1]{0}', space=sflag, size = 0x4, scoped, tag = 'scoped memory for tpu_custom_call.1']
    #allocation11 [shape = 'u8[65536]{0}', space=vmem, size = 0x10000, scoped, tag = 'output window, operand 0, single buffered']
    %9 = vsyncpa [#allocation4], 0
    %10 = vsyncpa [#allocation7], 0
    %11 = vsyncpa [#allocation10], 0
    %12 = vsyncpa [#allocation5], 0
    // Predicated region
    $region2: #{tpu_custom_call.1} parent=1 // pred_check
      _
    $region3: #{tpu_custom_call.1} parent=1 // pred_check_branch
      %14 = sbr.rel (0) target = $region5
    $region4: #{tpu_custom_call.1} parent=1 // pred_region
      %16 = vsyncadd [#allocation4], 0
      %s17 = sshll.u32 %s0, 4
      %s18 = int_to_ptr.hbm [resolvable:$true] %s17
      %s19 = sshll.u32 [#allocation3], 4
      %s20 = int_to_ptr.vmem [resolvable:$true] %s19
      %25 = dma.hbm_to_vmem [thread:$0]  %s18, 4096, %s20, [#allocation4], 128, 128, 8
    $region5: #{tpu_custom_call.1} parent=1 // pred_fallthru
      _
    // Predicated region
    $region6: #{tpu_custom_call.1} parent=1 // pred_check
      _
    $region7: #{tpu_custom_call.1} parent=1 // pred_check_branch
      %27 = sbr.rel (0) target = $region9
    $region8: #{tpu_custom_call.1} parent=1 // pred_region
      %29 = vsyncadd [#allocation7], 0
      %s30 = sshll.u32 %s1, 4
      %s31 = int_to_ptr.hbm [resolvable:$true] %s30
      %s32 = sshll.u32 [#allocation6], 4
      %s33 = int_to_ptr.vmem [resolvable:$true] %s32
      %38 = dma.hbm_to_vmem [thread:$0]  %s31, 2048, %s33, [#allocation7], 64, 64, 4
    $region9: #{tpu_custom_call.1} parent=1 // pred_fallthru
      _
    // Predicated region
    $region10: #{tpu_custom_call.1} parent=1 // pred_check
      _
    $region11: #{tpu_custom_call.1} parent=1 // pred_check_branch
      %40 = sbr.rel (0) target = $region13
    $region12: #{tpu_custom_call.1} parent=1 // pred_region
      %42 = vsyncadd [#allocation7], 0
      %s43 = sshll.u32 %s2, 4
      %s44 = int_to_ptr.hbm [resolvable:$true] %s43
      %s45 = sshll.u32 [#allocation8], 4
      %s46 = int_to_ptr.vmem [resolvable:$true] %s45
      %51 = dma.hbm_to_vmem [thread:$0]  %s44, 1024, %s46, [#allocation7], 64, 64, 4
    $region13: #{tpu_custom_call.1} parent=1 // pred_fallthru
      _
    // Predicated region
    $region14: #{tpu_custom_call.1} parent=1 // pred_check
      _
    $region15: #{tpu_custom_call.1} parent=1 // pred_check_branch
      %53 = sbr.rel (0) target = $region17
    $region16: #{tpu_custom_call.1} parent=1 // pred_region
      %55 = vsyncadd [#allocation10], 0
      %s56 = sshll.u32 %s3, 4
      %s57 = int_to_ptr.hbm [resolvable:$true] %s56
      %s58 = sshll.u32 [#allocation9], 4
      %s59 = int_to_ptr.vmem [resolvable:$true] %s58
      %64 = dma.hbm_to_vmem [thread:$0]  %s57, 4096, %s59, [#allocation10], 128, 128, 8
    $region17: #{tpu_custom_call.1} parent=1 // pred_fallthru
      _
    // Predicated region
    $region18: #{tpu_custom_call.1} parent=1 // pred_check
      _
    $region19: #{tpu_custom_call.1} parent=1 // pred_check_branch
      %66 = sbr.rel (0) target = $region21
    $region20: #{tpu_custom_call.1} parent=1 // pred_region
      %68 = dma.done [#allocation4], 4096
    $region21: #{tpu_custom_call.1} parent=1 // pred_fallthru
      _
    // Predicated region
    $region22: #{tpu_custom_call.1} parent=1 // pred_check
      _
    $region23: #{tpu_custom_call.1} parent=1 // pred_check_branch
      %70 = sbr.rel (0) target = $region25
    $region24: #{tpu_custom_call.1} parent=1 // pred_region
      %72 = dma.done [#allocation7], 2048
    $region25: #{tpu_custom_call.1} parent=1 // pred_fallthru
      _
    // Predicated region
    $region26: #{tpu_custom_call.1} parent=1 // pred_check
      _
    $region27: #{tpu_custom_call.1} parent=1 // pred_check_branch
      %74 = sbr.rel (0) target = $region29
    $region28: #{tpu_custom_call.1} parent=1 // pred_region
      %76 = dma.done [#allocation7], 1024
    $region29: #{tpu_custom_call.1} parent=1 // pred_fallthru
      _
    // Predicated region
    $region30: #{tpu_custom_call.1} parent=1 // pred_check
      _
    $region31: #{tpu_custom_call.1} parent=1 // pred_check_branch
      %78 = sbr.rel (0) target = $region33
    $region32: #{tpu_custom_call.1} parent=1 // pred_region
      %80 = dma.done [#allocation10], 4096
    $region33: #{tpu_custom_call.1} parent=1 // pred_fallthru
      _
    %p81 = scmp.eq.s32.totalorder 0, 0
    // Predicated region
    $region34: #{tpu_custom_call.1} parent=1 // pred_check
      %p82 = pneg %p81
    $region35: #{tpu_custom_call.1} parent=1 // pred_check_branch
      %84 = sbr.rel (%p82) target = $region37
    $region36: #{tpu_custom_call.1} parent=1 // pred_region
      %85 = vst [vmem:[#allocation2] sm:$0xff] 0.0
      %86 = vst [vmem:[#allocation2 + $0x8] sm:$0xff] 0.0
      %87 = vst [vmem:[#allocation2 + $0x10] sm:$0xff] 0.0
      %88 = vst [vmem:[#allocation2 + $0x18] sm:$0xff] 0.0
      %89 = vst [vmem:[#allocation2 + $0x20] sm:$0xff] 0.0
      %90 = vst [vmem:[#allocation2 + $0x28] sm:$0xff] 0.0
      %91 = vst [vmem:[#allocation2 + $0x30] sm:$0xff] 0.0
      %92 = vst [vmem:[#allocation2 + $0x38] sm:$0xff] 0.0
      %93 = vst [vmem:[#allocation2 + $0x40] sm:$0xff] 0.0
      %94 = vst [vmem:[#allocation2 + $0x48] sm:$0xff] 0.0
      %95 = vst [vmem:[#allocation2 + $0x50] sm:$0xff] 0.0
      %96 = vst [vmem:[#allocation2 + $0x58] sm:$0xff] 0.0
      %97 = vst [vmem:[#allocation2 + $0x60] sm:$0xff] 0.0
      %98 = vst [vmem:[#allocation2 + $0x68] sm:$0xff] 0.0
      %99 = vst [vmem:[#allocation2 + $0x70] sm:$0xff] 0.0
      %100 = vst [vmem:[#allocation2 + $0x78] sm:$0xff] 0.0
      %101 = vst [vmem:[#allocation2 + $0x80] sm:$0xff] 0.0
      %102 = vst [vmem:[#allocation2 + $0x88] sm:$0xff] 0.0
      %103 = vst [vmem:[#allocation2 + $0x90] sm:$0xff] 0.0
      %104 = vst [vmem:[#allocation2 + $0x98] sm:$0xff] 0.0
      %105 = vst [vmem:[#allocation2 + $0xa0] sm:$0xff] 0.0
      %106 = vst [vmem:[#allocation2 + $0xa8] sm:$0xff] 0.0
      %107 = vst [vmem:[#allocation2 + $0xb0] sm:$0xff] 0.0
      %108 = vst [vmem:[#allocation2 + $0xb8] sm:$0xff] 0.0
      %109 = vst [vmem:[#allocation2 + $0xc0] sm:$0xff] 0.0
      %110 = vst [vmem:[#allocation2 + $0xc8] sm:$0xff] 0.0
      %111 = vst [vmem:[#allocation2 + $0xd0] sm:$0xff] 0.0
      %112 = vst [vmem:[#allocation2 + $0xd8] sm:$0xff] 0.0
      %113 = vst [vmem:[#allocation2 + $0xe0] sm:$0xff] 0.0
      %114 = vst [vmem:[#allocation2 + $0xe8] sm:$0xff] 0.0
      %115 = vst [vmem:[#allocation2 + $0xf0] sm:$0xff] 0.0
      %116 = vst [vmem:[#allocation2 + $0xf8] sm:$0xff] 0.0
    $region37: #{tpu_custom_call.1} parent=1 // pred_fallthru
      _
    %v117 = vld [vmem:[#allocation2] sm:$0xff]
    %v118 = vld [vmem:[#allocation2 + $0x8] sm:$0xff]
    %v119 = vld [vmem:[#allocation2 + $0x10] sm:$0xff]
    %v120 = vld [vmem:[#allocation2 + $0x18] sm:$0xff]
    %v121 = vld [vmem:[#allocation2 + $0x20] sm:$0xff]
    %v122 = vld [vmem:[#allocation2 + $0x28] sm:$0xff]
    %v123 = vld [vmem:[#allocation2 + $0x30] sm:$0xff]
    %v124 = vld [vmem:[#allocation2 + $0x38] sm:$0xff]
    %v125 = vld [vmem:[#allocation2 + $0x40] sm:$0xff]
    %v126 = vld [vmem:[#allocation2 + $0x48] sm:$0xff]
    %v127 = vld [vmem:[#allocation2 + $0x50] sm:$0xff]
    %v128 = vld [vmem:[#allocation2 + $0x58] sm:$0xff]
    %v129 = vld [vmem:[#allocation2 + $0x60] sm:$0xff]
    %v130 = vld [vmem:[#allocation2 + $0x68] sm:$0xff]
    %v131 = vld [vmem:[#allocation2 + $0x70] sm:$0xff]
    %v132 = vld [vmem:[#allocation2 + $0x78] sm:$0xff]
    %v133 = vld [vmem:[#allocation2 + $0x80] sm:$0xff]
    %v134 = vld [vmem:[#allocation2 + $0x88] sm:$0xff]
    %v135 = vld [vmem:[#allocation2 + $0x90] sm:$0xff]
    %v136 = vld [vmem:[#allocation2 + $0x98] sm:$0xff]
    %v137 = vld [vmem:[#allocation2 + $0xa0] sm:$0xff]
    %v138 = vld [vmem:[#allocation2 + $0xa8] sm:$0xff]
    %v139 = vld [vmem:[#allocation2 + $0xb0] sm:$0xff]
    %v140 = vld [vmem:[#allocation2 + $0xb8] sm:$0xff]
    %v141 = vld [vmem:[#allocation2 + $0xc0] sm:$0xff]
    %v142 = vld [vmem:[#allocation2 + $0xc8] sm:$0xff]
    %v143 = vld [vmem:[#allocation2 + $0xd0] sm:$0xff]
    %v144 = vld [vmem:[#allocation2 + $0xd8] sm:$0xff]
    %v145 = vld [vmem:[#allocation2 + $0xe0] sm:$0xff]
    %v146 = vld [vmem:[#allocation2 + $0xe8] sm:$0xff]
    %v147 = vld [vmem:[#allocation2 + $0xf0] sm:$0xff]
    %v148 = vld [vmem:[#allocation2 + $0xf8] sm:$0xff]
    %v149 = vld [vmem:[#allocation3] sm:$0xff]
    %v150 = vld [vmem:[#allocation3 + $0x8] sm:$0xff]
    %v151 = vld [vmem:[#allocation3 + $0x10] sm:$0xff]
    %v152 = vld [vmem:[#allocation3 + $0x18] sm:$0xff]
    %v153 = vld [vmem:[#allocation3 + $0x20] sm:$0xff]
    %v154 = vld [vmem:[#allocation3 + $0x28] sm:$0xff]
    %v155 = vld [vmem:[#allocation3 + $0x30] sm:$0xff]
    %v156 = vld [vmem:[#allocation3 + $0x38] sm:$0xff]
    %v157 = vld [vmem:[#allocation3 + $0x40] sm:$0xff]
    %v158 = vld [vmem:[#allocation3 + $0x48] sm:$0xff]
    %v159 = vld [vmem:[#allocation3 + $0x50] sm:$0xff]
    %v160 = vld [vmem:[#allocation3 + $0x58] sm:$0xff]
    %v161 = vld [vmem:[#allocation3 + $0x60] sm:$0xff]
    %v162 = vld [vmem:[#allocation3 + $0x68] sm:$0xff]
    %v163 = vld [vmem:[#allocation3 + $0x70] sm:$0xff]
    %v164 = vld [vmem:[#allocation3 + $0x78] sm:$0xff]
    %v165 = vld [vmem:[#allocation3 + $0x80] sm:$0xff]
    %v166 = vld [vmem:[#allocation3 + $0x88] sm:$0xff]
    %v167 = vld [vmem:[#allocation3 + $0x90] sm:$0xff]
    %v168 = vld [vmem:[#allocation3 + $0x98] sm:$0xff]
    %v169 = vld [vmem:[#allocation3 + $0xa0] sm:$0xff]
    %v170 = vld [vmem:[#allocation3 + $0xa8] sm:$0xff]
    %v171 = vld [vmem:[#allocation3 + $0xb0] sm:$0xff]
    %v172 = vld [vmem:[#allocation3 + $0xb8] sm:$0xff]
    %v173 = vld [vmem:[#allocation3 + $0xc0] sm:$0xff]
    %v174 = vld [vmem:[#allocation3 + $0xc8] sm:$0xff]
    %v175 = vld [vmem:[#allocation3 + $0xd0] sm:$0xff]
    %v176 = vld [vmem:[#allocation3 + $0xd8] sm:$0xff]
    %v177 = vld [vmem:[#allocation3 + $0xe0] sm:$0xff]
    %v178 = vld [vmem:[#allocation3 + $0xe8] sm:$0xff]
    %v179 = vld [vmem:[#allocation3 + $0xf0] sm:$0xff]
    %v180 = vld [vmem:[#allocation3 + $0xf8] sm:$0xff]
    %v181 = vld [vmem:[#allocation6] sm:$0xf]
    %v182 = vld [vmem:[#allocation6 + $0x4] sm:$0xf]
    %v183 = vld [vmem:[#allocation6 + $0x8] sm:$0xf]
    %v184 = vld [vmem:[#allocation6 + $0xc] sm:$0xf]
    %v185 = vld [vmem:[#allocation6 + $0x10] sm:$0xf]
    %v186 = vld [vmem:[#allocation6 + $0x14] sm:$0xf]
    %v187 = vld [vmem:[#allocation6 + $0x18] sm:$0xf]
    %v188 = vld [vmem:[#allocation6 + $0x1c] sm:$0xf]
    %v189 = vld [vmem:[#allocation6 + $0x20] sm:$0xf]
    %v190 = vld [vmem:[#allocation6 + $0x24] sm:$0xf]
    %v191 = vld [vmem:[#allocation6 + $0x28] sm:$0xf]
    %v192 = vld [vmem:[#allocation6 + $0x2c] sm:$0xf]
    %v193 = vld [vmem:[#allocation6 + $0x30] sm:$0xf]
    %v194 = vld [vmem:[#allocation6 + $0x34] sm:$0xf]
    %v195 = vld [vmem:[#allocation6 + $0x38] sm:$0xf]
    %v196 = vld [vmem:[#allocation6 + $0x3c] sm:$0xf]
    %v197 = vld [vmem:[#allocation6 + $0x40] sm:$0xf]
    %v198 = vld [vmem:[#allocation6 + $0x44] sm:$0xf]
    %v199 = vld [vmem:[#allocation6 + $0x48] sm:$0xf]
    %v200 = vld [vmem:[#allocation6 + $0x4c] sm:$0xf]
    %v201 = vld [vmem:[#allocation6 + $0x50] sm:$0xf]
    %v202 = vld [vmem:[#allocation6 + $0x54] sm:$0xf]
    %v203 = vld [vmem:[#allocation6 + $0x58] sm:$0xf]
    %v204 = vld [vmem:[#allocation6 + $0x5c] sm:$0xf]
    %v205 = vld [vmem:[#allocation6 + $0x60] sm:$0xf]
    %v206 = vld [vmem:[#allocation6 + $0x64] sm:$0xf]
    %v207 = vld [vmem:[#allocation6 + $0x68] sm:$0xf]
    %v208 = vld [vmem:[#allocation6 + $0x6c] sm:$0xf]
    %v209 = vld [vmem:[#allocation6 + $0x70] sm:$0xf]
    %v210 = vld [vmem:[#allocation6 + $0x74] sm:$0xf]
    %v211 = vld [vmem:[#allocation6 + $0x78] sm:$0xf]
    %v212 = vld [vmem:[#allocation6 + $0x7c] sm:$0xf]
    %v245 = vunpack.c.l.b16 %v149
    %v246 = vunpack.c.h.b16 %v149
    %v247 = vunpack.c.l.b16 %v150
    %v248 = vunpack.c.h.b16 %v150
    %v249 = vunpack.c.l.b16 %v151
    %v250 = vunpack.c.h.b16 %v151
    %v251 = vunpack.c.l.b16 %v152
    %v252 = vunpack.c.h.b16 %v152
    %v253 = vunpack.c.l.b16 %v153
    %v254 = vunpack.c.h.b16 %v153
    %v255 = vunpack.c.l.b16 %v154
    %v256 = vunpack.c.h.b16 %v154
    %v257 = vunpack.c.l.b16 %v155
    %v258 = vunpack.c.h.b16 %v155
    %v259 = vunpack.c.l.b16 %v156
    %v260 = vunpack.c.h.b16 %v156
    %v261 = vunpack.c.l.b16 %v157
    %v262 = vunpack.c.h.b16 %v157
    %v263 = vunpack.c.l.b16 %v158
    %v264 = vunpack.c.h.b16 %v158
    %v265 = vunpack.c.l.b16 %v159
    %v266 = vunpack.c.h.b16 %v159
    %v267 = vunpack.c.l.b16 %v160
    %v268 = vunpack.c.h.b16 %v160
    %v269 = vunpack.c.l.b16 %v161
    %v270 = vunpack.c.h.b16 %v161
    %v271 = vunpack.c.l.b16 %v162
    %v272 = vunpack.c.h.b16 %v162
    %v273 = vunpack.c.l.b16 %v163
    %v274 = vunpack.c.h.b16 %v163
    %v275 = vunpack.c.l.b16 %v164
    %v276 = vunpack.c.h.b16 %v164
    %v277 = vunpack.c.l.b16 %v165
    %v278 = vunpack.c.h.b16 %v165
    %v279 = vunpack.c.l.b16 %v166
    %v280 = vunpack.c.h.b16 %v166
    %v281 = vunpack.c.l.b16 %v167
    %v282 = vunpack.c.h.b16 %v167
    %v283 = vunpack.c.l.b16 %v168
    %v284 = vunpack.c.h.b16 %v168
    %v285 = vunpack.c.l.b16 %v169
    %v286 = vunpack.c.h.b16 %v169
    %v287 = vunpack.c.l.b16 %v170
    %v288 = vunpack.c.h.b16 %v170
    %v289 = vunpack.c.l.b16 %v171
    %v290 = vunpack.c.h.b16 %v171
    %v291 = vunpack.c.l.b16 %v172
    %v292 = vunpack.c.h.b16 %v172
    %v293 = vunpack.c.l.b16 %v173
    %v294 = vunpack.c.h.b16 %v173
    %v295 = vunpack.c.l.b16 %v174
    %v296 = vunpack.c.h.b16 %v174
    %v297 = vunpack.c.l.b16 %v175
    %v298 = vunpack.c.h.b16 %v175
    %v299 = vunpack.c.l.b16 %v176
    %v300 = vunpack.c.h.b16 %v176
    %v301 = vunpack.c.l.b16 %v177
    %v302 = vunpack.c.h.b16 %v177
    %v303 = vunpack.c.l.b16 %v178
    %v304 = vunpack.c.h.b16 %v178
    %v305 = vunpack.c.l.b16 %v179
    %v306 = vunpack.c.h.b16 %v179
    %v307 = vunpack.c.l.b16 %v180
    %v308 = vunpack.c.h.b16 %v180
    %v309 = vpack.c.b16 %v247, %v245
    %v310 = vpack.c.b16 %v248, %v246
    %v311 = vpack.c.b16 %v251, %v249
    %v312 = vpack.c.b16 %v252, %v250
    %v313 = vpack.c.b16 %v255, %v253
    %v314 = vpack.c.b16 %v256, %v254
    %v315 = vpack.c.b16 %v259, %v257
    %v316 = vpack.c.b16 %v260, %v258
    %v317 = vpack.c.b16 %v263, %v261
    %v318 = vpack.c.b16 %v264, %v262
    %v319 = vpack.c.b16 %v267, %v265
    %v320 = vpack.c.b16 %v268, %v266
    %v321 = vpack.c.b16 %v271, %v269
    %v322 = vpack.c.b16 %v272, %v270
    %v323 = vpack.c.b16 %v275, %v273
    %v324 = vpack.c.b16 %v276, %v274
    %v325 = vpack.c.b16 %v279, %v277
    %v326 = vpack.c.b16 %v280, %v278
    %v327 = vpack.c.b16 %v283, %v281
    %v328 = vpack.c.b16 %v284, %v282
    %v329 = vpack.c.b16 %v287, %v285
    %v330 = vpack.c.b16 %v288, %v286
    %v331 = vpack.c.b16 %v291, %v289
    %v332 = vpack.c.b16 %v292, %v290
    %v333 = vpack.c.b16 %v295, %v293
    %v334 = vpack.c.b16 %v296, %v294
    %v335 = vpack.c.b16 %v299, %v297
    %v336 = vpack.c.b16 %v300, %v298
    %v337 = vpack.c.b16 %v303, %v301
    %v338 = vpack.c.b16 %v304, %v302
    %v339 = vpack.c.b16 %v307, %v305
    %v340 = vpack.c.b16 %v308, %v306
    %v405 = vunpack.c.l.b16 %v181
    %v406 = vunpack.c.l.b16 %v182
    %v407 = vunpack.c.l.b16 %v183
    %v408 = vunpack.c.l.b16 %v184
    %v409 = vunpack.c.l.b16 %v185
    %v410 = vunpack.c.l.b16 %v186
    %v411 = vunpack.c.l.b16 %v187
    %v412 = vunpack.c.l.b16 %v188
    %v413 = vunpack.c.l.b16 %v189
    %v414 = vunpack.c.l.b16 %v190
    %v415 = vunpack.c.l.b16 %v191
    %v416 = vunpack.c.l.b16 %v192
    %v417 = vunpack.c.l.b16 %v193
    %v418 = vunpack.c.l.b16 %v194
    %v419 = vunpack.c.l.b16 %v195
    %v420 = vunpack.c.l.b16 %v196
    %v421 = vunpack.c.l.b16 %v197
    %v422 = vunpack.c.l.b16 %v198
    %v423 = vunpack.c.l.b16 %v199
    %v424 = vunpack.c.l.b16 %v200
    %v425 = vunpack.c.l.b16 %v201
    %v426 = vunpack.c.l.b16 %v202
    %v427 = vunpack.c.l.b16 %v203
    %v428 = vunpack.c.l.b16 %v204
    %v429 = vunpack.c.l.b16 %v205
    %v430 = vunpack.c.l.b16 %v206
    %v431 = vunpack.c.l.b16 %v207
    %v432 = vunpack.c.l.b16 %v208
    %v433 = vunpack.c.l.b16 %v209
    %v434 = vunpack.c.l.b16 %v210
    %v435 = vunpack.c.l.b16 %v211
    %v436 = vunpack.c.l.b16 %v212
    %v437 = vpack.c.b16 %v406, %v405
    %v438 = vpack.c.b16 %v408, %v407
    %v439 = vpack.c.b16 %v410, %v409
    %v440 = vpack.c.b16 %v412, %v411
    %v441 = vpack.c.b16 %v414, %v413
    %v442 = vpack.c.b16 %v416, %v415
    %v443 = vpack.c.b16 %v418, %v417
    %v444 = vpack.c.b16 %v420, %v419
    %v445 = vpack.c.b16 %v422, %v421
    %v446 = vpack.c.b16 %v424, %v423
    %v447 = vpack.c.b16 %v426, %v425
    %v448 = vpack.c.b16 %v428, %v427
    %v449 = vpack.c.b16 %v430, %v429
    %v450 = vpack.c.b16 %v432, %v431
    %v451 = vpack.c.b16 %v434, %v433
    %v452 = vpack.c.b16 %v436, %v435
    %469 = vmatpush.bf16.msra.mxu0 %v444
    %470 = vmatpush.bf16.msra.mxu0 %v443
    %471 = vmatpush.bf16.msra.mxu0 %v442
    %472 = vmatpush.bf16.msra.mxu0 %v441
    %473 = vmatpush.bf16.msra.mxu0 %v440
    %474 = vmatpush.bf16.msra.mxu0 %v439
    %475 = vmatpush.bf16.msra.mxu0 %v438
    %476 = vmatpush.bf16.msra.mxu0 %v437
    %477 = vmatmul.bf16.gmra.mxu0 %v309
    %v478 = vpop.f32.mrf.mxu0
    %v479 = vadd.f32 0.0, %v478
    %v480 = vpop.f32.mrf.mxu0
    %v481 = vadd.f32 0.0, %v480
    %482 = vmatmul.bf16.gmra.mxu0 %v311
    %v483 = vpop.f32.mrf.mxu0
    %v484 = vadd.f32 0.0, %v483
    %v485 = vpop.f32.mrf.mxu0
    %v486 = vadd.f32 0.0, %v485
    %487 = vmatmul.bf16.gmra.mxu0 %v313
    %v488 = vpop.f32.mrf.mxu0
    %v489 = vadd.f32 0.0, %v488
    %v490 = vpop.f32.mrf.mxu0
    %v491 = vadd.f32 0.0, %v490
    %492 = vmatmul.bf16.gmra.mxu0 %v315
    %v493 = vpop.f32.mrf.mxu0
    %v494 = vadd.f32 0.0, %v493
    %v495 = vpop.f32.mrf.mxu0
    %v496 = vadd.f32 0.0, %v495
    %497 = vmatmul.bf16.gmra.mxu0 %v317
    %v498 = vpop.f32.mrf.mxu0
    %v499 = vadd.f32 0.0, %v498
    %v500 = vpop.f32.mrf.mxu0
    %v501 = vadd.f32 0.0, %v500
    %502 = vmatmul.bf16.gmra.mxu0 %v319
    %v503 = vpop.f32.mrf.mxu0
    %v504 = vadd.f32 0.0, %v503
    %v505 = vpop.f32.mrf.mxu0
    %v506 = vadd.f32 0.0, %v505
    %507 = vmatmul.bf16.gmra.mxu0 %v321
    %v508 = vpop.f32.mrf.mxu0
    %v509 = vadd.f32 0.0, %v508
    %v510 = vpop.f32.mrf.mxu0
    %v511 = vadd.f32 0.0, %v510
    %512 = vmatmul.bf16.gmra.mxu0 %v323
    %v513 = vpop.f32.mrf.mxu0
    %v514 = vadd.f32 0.0, %v513
    %v515 = vpop.f32.mrf.mxu0
    %v516 = vadd.f32 0.0, %v515
    %517 = vmatmul.bf16.gmra.mxu0 %v325
    %v518 = vpop.f32.mrf.mxu0
    %v519 = vadd.f32 0.0, %v518
    %v520 = vpop.f32.mrf.mxu0
    %v521 = vadd.f32 0.0, %v520
    %522 = vmatmul.bf16.gmra.mxu0 %v327
    %v523 = vpop.f32.mrf.mxu0
    %v524 = vadd.f32 0.0, %v523
    %v525 = vpop.f32.mrf.mxu0
    %v526 = vadd.f32 0.0, %v525
    %527 = vmatmul.bf16.gmra.mxu0 %v329
    %v528 = vpop.f32.mrf.mxu0
    %v529 = vadd.f32 0.0, %v528
    %v530 = vpop.f32.mrf.mxu0
    %v531 = vadd.f32 0.0, %v530
    %532 = vmatmul.bf16.gmra.mxu0 %v331
    %v533 = vpop.f32.mrf.mxu0
    %v534 = vadd.f32 0.0, %v533
    %v535 = vpop.f32.mrf.mxu0
    %v536 = vadd.f32 0.0, %v535
    %537 = vmatmul.bf16.gmra.mxu0 %v333
    %v538 = vpop.f32.mrf.mxu0
    %v539 = vadd.f32 0.0, %v538
    %v540 = vpop.f32.mrf.mxu0
    %v541 = vadd.f32 0.0, %v540
    %542 = vmatmul.bf16.gmra.mxu0 %v335
    %v543 = vpop.f32.mrf.mxu0
    %v544 = vadd.f32 0.0, %v543
    %v545 = vpop.f32.mrf.mxu0
    %v546 = vadd.f32 0.0, %v545
    %547 = vmatmul.bf16.gmra.mxu0 %v337
    %v548 = vpop.f32.mrf.mxu0
    %v549 = vadd.f32 0.0, %v548
    %v550 = vpop.f32.mrf.mxu0
    %v551 = vadd.f32 0.0, %v550
    %552 = vmatmul.bf16.gmra.mxu0 %v339
    %v553 = vpop.f32.mrf.mxu0
    %v554 = vadd.f32 0.0, %v553
    %v555 = vpop.f32.mrf.mxu0
    %v556 = vadd.f32 0.0, %v555
    %557 = vdwg.mxu0
    %558 = vmatpush.bf16.msra.mxu0 %v452
    %559 = vmatpush.bf16.msra.mxu0 %v451
    %560 = vmatpush.bf16.msra.mxu0 %v450
    %561 = vmatpush.bf16.msra.mxu0 %v449
    %562 = vmatpush.bf16.msra.mxu0 %v448
    %563 = vmatpush.bf16.msra.mxu0 %v447
    %564 = vmatpush.bf16.msra.mxu0 %v446
    %565 = vmatpush.bf16.msra.mxu0 %v445
    %566 = vmatmul.bf16.gmra.mxu0 %v310
    %v567 = vpop.f32.mrf.mxu0
    %v568 = vadd.f32 %v479, %v567
    %v569 = vpop.f32.mrf.mxu0
    %v570 = vadd.f32 %v481, %v569
    %571 = vmatmul.bf16.gmra.mxu0 %v312
    %v572 = vpop.f32.mrf.mxu0
    %v573 = vadd.f32 %v484, %v572
    %v574 = vpop.f32.mrf.mxu0
    %v575 = vadd.f32 %v486, %v574
    %576 = vmatmul.bf16.gmra.mxu0 %v314
    %v577 = vpop.f32.mrf.mxu0
    %v578 = vadd.f32 %v489, %v577
    %v579 = vpop.f32.mrf.mxu0
    %v580 = vadd.f32 %v491, %v579
    %581 = vmatmul.bf16.gmra.mxu0 %v316
    %v582 = vpop.f32.mrf.mxu0
    %v583 = vadd.f32 %v494, %v582
    %v584 = vpop.f32.mrf.mxu0
    %v585 = vadd.f32 %v496, %v584
    %586 = vmatmul.bf16.gmra.mxu0 %v318
    %v587 = vpop.f32.mrf.mxu0
    %v588 = vadd.f32 %v499, %v587
    %v589 = vpop.f32.mrf.mxu0
    %v590 = vadd.f32 %v501, %v589
    %591 = vmatmul.bf16.gmra.mxu0 %v320
    %v592 = vpop.f32.mrf.mxu0
    %v593 = vadd.f32 %v504, %v592
    %v594 = vpop.f32.mrf.mxu0
    %v595 = vadd.f32 %v506, %v594
    %596 = vmatmul.bf16.gmra.mxu0 %v322
    %v597 = vpop.f32.mrf.mxu0
    %v598 = vadd.f32 %v509, %v597
    %v599 = vpop.f32.mrf.mxu0
    %v600 = vadd.f32 %v511, %v599
    %601 = vmatmul.bf16.gmra.mxu0 %v324
    %v602 = vpop.f32.mrf.mxu0
    %v603 = vadd.f32 %v514, %v602
    %v604 = vpop.f32.mrf.mxu0
    %v605 = vadd.f32 %v516, %v604
    %606 = vmatmul.bf16.gmra.mxu0 %v326
    %v607 = vpop.f32.mrf.mxu0
    %v608 = vadd.f32 %v519, %v607
    %v609 = vpop.f32.mrf.mxu0
    %v610 = vadd.f32 %v521, %v609
    %611 = vmatmul.bf16.gmra.mxu0 %v328
    %v612 = vpop.f32.mrf.mxu0
    %v613 = vadd.f32 %v524, %v612
    %v614 = vpop.f32.mrf.mxu0
    %v615 = vadd.f32 %v526, %v614
    %616 = vmatmul.bf16.gmra.mxu0 %v330
    %v617 = vpop.f32.mrf.mxu0
    %v618 = vadd.f32 %v529, %v617
    %v619 = vpop.f32.mrf.mxu0
    %v620 = vadd.f32 %v531, %v619
    %621 = vmatmul.bf16.gmra.mxu0 %v332
    %v622 = vpop.f32.mrf.mxu0
    %v623 = vadd.f32 %v534, %v622
    %v624 = vpop.f32.mrf.mxu0
    %v625 = vadd.f32 %v536, %v624
    %626 = vmatmul.bf16.gmra.mxu0 %v334
    %v627 = vpop.f32.mrf.mxu0
    %v628 = vadd.f32 %v539, %v627
    %v629 = vpop.f32.mrf.mxu0
    %v630 = vadd.f32 %v541, %v629
    %631 = vmatmul.bf16.gmra.mxu0 %v336
    %v632 = vpop.f32.mrf.mxu0
    %v633 = vadd.f32 %v544, %v632
    %v634 = vpop.f32.mrf.mxu0
    %v635 = vadd.f32 %v546, %v634
    %636 = vmatmul.bf16.gmra.mxu0 %v338
    %v637 = vpop.f32.mrf.mxu0
    %v638 = vadd.f32 %v549, %v637
    %v639 = vpop.f32.mrf.mxu0
    %v640 = vadd.f32 %v551, %v639
    %641 = vmatmul.bf16.gmra.mxu0 %v340
    %v642 = vpop.f32.mrf.mxu0
    %v643 = vadd.f32 %v554, %v642
    %v644 = vpop.f32.mrf.mxu0
    %v645 = vadd.f32 %v556, %v644
    %646 = vdwg.mxu0
    %v647 = vadd.f32 %v117, %v568
    %v648 = vadd.f32 %v118, %v570
    %v649 = vadd.f32 %v119, %v573
    %v650 = vadd.f32 %v120, %v575
    %v651 = vadd.f32 %v121, %v578
    %v652 = vadd.f32 %v122, %v580
    %v653 = vadd.f32 %v123, %v583
    %v654 = vadd.f32 %v124, %v585
    %v655 = vadd.f32 %v125, %v588
    %v656 = vadd.f32 %v126, %v590
    %v657 = vadd.f32 %v127, %v593
    %v658 = vadd.f32 %v128, %v595
    %v659 = vadd.f32 %v129, %v598
    %v660 = vadd.f32 %v130, %v600
    %v661 = vadd.f32 %v131, %v603
    %v662 = vadd.f32 %v132, %v605
    %v663 = vadd.f32 %v133, %v608
    %v664 = vadd.f32 %v134, %v610
    %v665 = vadd.f32 %v135, %v613
    %v666 = vadd.f32 %v136, %v615
    %v667 = vadd.f32 %v137, %v618
    %v668 = vadd.f32 %v138, %v620
    %v669 = vadd.f32 %v139, %v623
    %v670 = vadd.f32 %v140, %v625
    %v671 = vadd.f32 %v141, %v628
    %v672 = vadd.f32 %v142, %v630
    %v673 = vadd.f32 %v143, %v633
    %v674 = vadd.f32 %v144, %v635
    %v675 = vadd.f32 %v145, %v638
    %v676 = vadd.f32 %v146, %v640
    %v677 = vadd.f32 %v147, %v643
    %v678 = vadd.f32 %v148, %v645
    %679 = vst [vmem:[#allocation2] sm:$0xff] %v647
    %680 = vst [vmem:[#allocation2 + $0x8] sm:$0xff] %v648
    %681 = vst [vmem:[#allocation2 + $0x10] sm:$0xff] %v649
    %682 = vst [vmem:[#allocation2 + $0x18] sm:$0xff] %v650
    %683 = vst [vmem:[#allocation2 + $0x20] sm:$0xff] %v651
    %684 = vst [vmem:[#allocation2 + $0x28] sm:$0xff] %v652
    %685 = vst [vmem:[#allocation2 + $0x30] sm:$0xff] %v653
    %686 = vst [vmem:[#allocation2 + $0x38] sm:$0xff] %v654
    %687 = vst [vmem:[#allocation2 + $0x40] sm:$0xff] %v655
    %688 = vst [vmem:[#allocation2 + $0x48] sm:$0xff] %v656
    %689 = vst [vmem:[#allocation2 + $0x50] sm:$0xff] %v657
    %690 = vst [vmem:[#allocation2 + $0x58] sm:$0xff] %v658
    %691 = vst [vmem:[#allocation2 + $0x60] sm:$0xff] %v659
    %692 = vst [vmem:[#allocation2 + $0x68] sm:$0xff] %v660
    %693 = vst [vmem:[#allocation2 + $0x70] sm:$0xff] %v661
    %694 = vst [vmem:[#allocation2 + $0x78] sm:$0xff] %v662
    %695 = vst [vmem:[#allocation2 + $0x80] sm:$0xff] %v663
    %696 = vst [vmem:[#allocation2 + $0x88] sm:$0xff] %v664
    %697 = vst [vmem:[#allocation2 + $0x90] sm:$0xff] %v665
    %698 = vst [vmem:[#allocation2 + $0x98] sm:$0xff] %v666
    %699 = vst [vmem:[#allocation2 + $0xa0] sm:$0xff] %v667
    %700 = vst [vmem:[#allocation2 + $0xa8] sm:$0xff] %v668
    %701 = vst [vmem:[#allocation2 + $0xb0] sm:$0xff] %v669
    %702 = vst [vmem:[#allocation2 + $0xb8] sm:$0xff] %v670
    %703 = vst [vmem:[#allocation2 + $0xc0] sm:$0xff] %v671
    %704 = vst [vmem:[#allocation2 + $0xc8] sm:$0xff] %v672
    %705 = vst [vmem:[#allocation2 + $0xd0] sm:$0xff] %v673
    %706 = vst [vmem:[#allocation2 + $0xd8] sm:$0xff] %v674
    %707 = vst [vmem:[#allocation2 + $0xe0] sm:$0xff] %v675
    %708 = vst [vmem:[#allocation2 + $0xe8] sm:$0xff] %v676
    %709 = vst [vmem:[#allocation2 + $0xf0] sm:$0xff] %v677
    %710 = vst [vmem:[#allocation2 + $0xf8] sm:$0xff] %v678
    // Predicated region
    $region38: #{tpu_custom_call.1} parent=1 // pred_check
      %p711 = pneg %p81
    $region39: #{tpu_custom_call.1} parent=1 // pred_check_branch
      %713 = sbr.rel (%p711) target = $region41
    $region40: #{tpu_custom_call.1} parent=1 // pred_region
      %v714 = vld [vmem:[#allocation2] sm:$0xff]
      %v715 = vld [vmem:[#allocation2 + $0x8] sm:$0xff]
      %v716 = vld [vmem:[#allocation2 + $0x10] sm:$0xff]
      %v717 = vld [vmem:[#allocation2 + $0x18] sm:$0xff]
      %v718 = vld [vmem:[#allocation2 + $0x20] sm:$0xff]
      %v719 = vld [vmem:[#allocation2 + $0x28] sm:$0xff]
      %v720 = vld [vmem:[#allocation2 + $0x30] sm:$0xff]
      %v721 = vld [vmem:[#allocation2 + $0x38] sm:$0xff]
      %v722 = vld [vmem:[#allocation2 + $0x40] sm:$0xff]
      %v723 = vld [vmem:[#allocation2 + $0x48] sm:$0xff]
      %v724 = vld [vmem:[#allocation2 + $0x50] sm:$0xff]
      %v725 = vld [vmem:[#allocation2 + $0x58] sm:$0xff]
      %v726 = vld [vmem:[#allocation2 + $0x60] sm:$0xff]
      %v727 = vld [vmem:[#allocation2 + $0x68] sm:$0xff]
      %v728 = vld [vmem:[#allocation2 + $0x70] sm:$0xff]
      %v729 = vld [vmem:[#allocation2 + $0x78] sm:$0xff]
      %v730 = vld [vmem:[#allocation2 + $0x80] sm:$0xff]
      %v731 = vld [vmem:[#allocation2 + $0x88] sm:$0xff]
      %v732 = vld [vmem:[#allocation2 + $0x90] sm:$0xff]
      %v733 = vld [vmem:[#allocation2 + $0x98] sm:$0xff]
      %v734 = vld [vmem:[#allocation2 + $0xa0] sm:$0xff]
      %v735 = vld [vmem:[#allocation2 + $0xa8] sm:$0xff]
      %v736 = vld [vmem:[#allocation2 + $0xb0] sm:$0xff]
      %v737 = vld [vmem:[#allocation2 + $0xb8] sm:$0xff]
      %v738 = vld [vmem:[#allocation2 + $0xc0] sm:$0xff]
      %v739 = vld [vmem:[#allocation2 + $0xc8] sm:$0xff]
      %v740 = vld [vmem:[#allocation2 + $0xd0] sm:$0xff]
      %v741 = vld [vmem:[#allocation2 + $0xd8] sm:$0xff]
      %v742 = vld [vmem:[#allocation2 + $0xe0] sm:$0xff]
      %v743 = vld [vmem:[#allocation2 + $0xe8] sm:$0xff]
      %v744 = vld [vmem:[#allocation2 + $0xf0] sm:$0xff]
      %v745 = vld [vmem:[#allocation2 + $0xf8] sm:$0xff]
      %v746 = vpack.c.bf16 %v715, %v714
      %v747 = vpack.c.bf16 %v717, %v716
      %v748 = vpack.c.bf16 %v719, %v718
      %v749 = vpack.c.bf16 %v721, %v720
      %v750 = vpack.c.bf16 %v723, %v722
      %v751 = vpack.c.bf16 %v725, %v724
      %v752 = vpack.c.bf16 %v727, %v726
      %v753 = vpack.c.bf16 %v729, %v728
      %v754 = vpack.c.bf16 %v731, %v730
      %v755 = vpack.c.bf16 %v733, %v732
      %v756 = vpack.c.bf16 %v735, %v734
      %v757 = vpack.c.bf16 %v737, %v736
      %v758 = vpack.c.bf16 %v739, %v738
      %v759 = vpack.c.bf16 %v741, %v740
      %v760 = vpack.c.bf16 %v743, %v742
      %v761 = vpack.c.bf16 %v745, %v744
      %v762 = vld [vmem:[#allocation8] sm:$0xf]
      %v763 = vld [vmem:[#allocation8 + $0x4] sm:$0xf]
      %v764 = vld [vmem:[#allocation8 + $0x8] sm:$0xf]
      %v765 = vld [vmem:[#allocation8 + $0xc] sm:$0xf]
      %v766 = vld [vmem:[#allocation8 + $0x10] sm:$0xf]
      %v767 = vld [vmem:[#allocation8 + $0x14] sm:$0xf]
      %v768 = vld [vmem:[#allocation8 + $0x18] sm:$0xf]
      %v769 = vld [vmem:[#allocation8 + $0x1c] sm:$0xf]
      %v770 = vld [vmem:[#allocation8 + $0x20] sm:$0xf]
      %v771 = vld [vmem:[#allocation8 + $0x24] sm:$0xf]
      %v772 = vld [vmem:[#allocation8 + $0x28] sm:$0xf]
      %v773 = vld [vmem:[#allocation8 + $0x2c] sm:$0xf]
      %v774 = vld [vmem:[#allocation8 + $0x30] sm:$0xf]
      %v775 = vld [vmem:[#allocation8 + $0x34] sm:$0xf]
      %v776 = vld [vmem:[#allocation8 + $0x38] sm:$0xf]
      %v777 = vld [vmem:[#allocation8 + $0x3c] sm:$0xf]
      %v778 = vld [vmem:[#allocation9] sm:$0xff]
      %v779 = vld [vmem:[#allocation9 + $0x8] sm:$0xff]
      %v780 = vld [vmem:[#allocation9 + $0x10] sm:$0xff]
      %v781 = vld [vmem:[#allocation9 + $0x18] sm:$0xff]
      %v782 = vld [vmem:[#allocation9 + $0x20] sm:$0xff]
      %v783 = vld [vmem:[#allocation9 + $0x28] sm:$0xff]
      %v784 = vld [vmem:[#allocation9 + $0x30] sm:$0xff]
      %v785 = vld [vmem:[#allocation9 + $0x38] sm:$0xff]
      %v786 = vld [vmem:[#allocation9 + $0x40] sm:$0xff]
      %v787 = vld [vmem:[#allocation9 + $0x48] sm:$0xff]
      %v788 = vld [vmem:[#allocation9 + $0x50] sm:$0xff]
      %v789 = vld [vmem:[#allocation9 + $0x58] sm:$0xff]
      %v790 = vld [vmem:[#allocation9 + $0x60] sm:$0xff]
      %v791 = vld [vmem:[#allocation9 + $0x68] sm:$0xff]
      %v792 = vld [vmem:[#allocation9 + $0x70] sm:$0xff]
      %v793 = vld [vmem:[#allocation9 + $0x78] sm:$0xff]
      %v794 = vld [vmem:[#allocation9 + $0x80] sm:$0xff]
      %v795 = vld [vmem:[#allocation9 + $0x88] sm:$0xff]
      %v796 = vld [vmem:[#allocation9 + $0x90] sm:$0xff]
      %v797 = vld [vmem:[#allocation9 + $0x98] sm:$0xff]
      %v798 = vld [vmem:[#allocation9 + $0xa0] sm:$0xff]
      %v799 = vld [vmem:[#allocation9 + $0xa8] sm:$0xff]
      %v800 = vld [vmem:[#allocation9 + $0xb0] sm:$0xff]
      %v801 = vld [vmem:[#allocation9 + $0xb8] sm:$0xff]
      %v802 = vld [vmem:[#allocation9 + $0xc0] sm:$0xff]
      %v803 = vld [vmem:[#allocation9 + $0xc8] sm:$0xff]
      %v804 = vld [vmem:[#allocation9 + $0xd0] sm:$0xff]
      %v805 = vld [vmem:[#allocation9 + $0xd8] sm:$0xff]
      %v806 = vld [vmem:[#allocation9 + $0xe0] sm:$0xff]
      %v807 = vld [vmem:[#allocation9 + $0xe8] sm:$0xff]
      %v808 = vld [vmem:[#allocation9 + $0xf0] sm:$0xff]
      %v809 = vld [vmem:[#allocation9 + $0xf8] sm:$0xff]
      %v826 = vunpack.c.l.b16 %v762
      %v827 = vunpack.c.l.b16 %v763
      %v828 = vunpack.c.l.b16 %v764
      %v829 = vunpack.c.l.b16 %v765
      %v830 = vunpack.c.l.b16 %v766
      %v831 = vunpack.c.l.b16 %v767
      %v832 = vunpack.c.l.b16 %v768
      %v833 = vunpack.c.l.b16 %v769
      %v834 = vunpack.c.l.b16 %v770
      %v835 = vunpack.c.l.b16 %v771
      %v836 = vunpack.c.l.b16 %v772
      %v837 = vunpack.c.l.b16 %v773
      %v838 = vunpack.c.l.b16 %v774
      %v839 = vunpack.c.l.b16 %v775
      %v840 = vunpack.c.l.b16 %v776
      %v841 = vunpack.c.l.b16 %v777
      %v842 = vpack.c.b16 %v827, %v826
      %v843 = vpack.c.b16 %v829, %v828
      %v844 = vpack.c.b16 %v831, %v830
      %v845 = vpack.c.b16 %v833, %v832
      %v846 = vpack.c.b16 %v835, %v834
      %v847 = vpack.c.b16 %v837, %v836
      %v848 = vpack.c.b16 %v839, %v838
      %v849 = vpack.c.b16 %v841, %v840
      %858 = vmatpush.bf16.msra.mxu0 %v849
      %859 = vmatpush.bf16.msra.mxu0 %v848
      %860 = vmatpush.bf16.msra.mxu0 %v847
      %861 = vmatpush.bf16.msra.mxu0 %v846
      %862 = vmatpush.bf16.msra.mxu0 %v845
      %863 = vmatpush.bf16.msra.mxu0 %v844
      %864 = vmatpush.bf16.msra.mxu0 %v843
      %865 = vmatpush.bf16.msra.mxu0 %v842
      %866 = vmatmul.bf16.gmra.mxu0 %v746
      %v867 = vpop.f32.mrf.mxu0
      %v868 = vadd.f32 %v778, %v867
      %v869 = vpop.f32.mrf.mxu0
      %v870 = vadd.f32 %v779, %v869
      %871 = vmatmul.bf16.gmra.mxu0 %v747
      %v872 = vpop.f32.mrf.mxu0
      %v873 = vadd.f32 %v780, %v872
      %v874 = vpop.f32.mrf.mxu0
      %v875 = vadd.f32 %v781, %v874
      %876 = vmatmul.bf16.gmra.mxu0 %v748
      %v877 = vpop.f32.mrf.mxu0
      %v878 = vadd.f32 %v782, %v877
      %v879 = vpop.f32.mrf.mxu0
      %v880 = vadd.f32 %v783, %v879
      %881 = vmatmul.bf16.gmra.mxu0 %v749
      %v882 = vpop.f32.mrf.mxu0
      %v883 = vadd.f32 %v784, %v882
      %v884 = vpop.f32.mrf.mxu0
      %v885 = vadd.f32 %v785, %v884
      %886 = vmatmul.bf16.gmra.mxu0 %v750
      %v887 = vpop.f32.mrf.mxu0
      %v888 = vadd.f32 %v786, %v887
      %v889 = vpop.f32.mrf.mxu0
      %v890 = vadd.f32 %v787, %v889
      %891 = vmatmul.bf16.gmra.mxu0 %v751
      %v892 = vpop.f32.mrf.mxu0
      %v893 = vadd.f32 %v788, %v892
      %v894 = vpop.f32.mrf.mxu0
      %v895 = vadd.f32 %v789, %v894
      %896 = vmatmul.bf16.gmra.mxu0 %v752
      %v897 = vpop.f32.mrf.mxu0
      %v898 = vadd.f32 %v790, %v897
      %v899 = vpop.f32.mrf.mxu0
      %v900 = vadd.f32 %v791, %v899
      %901 = vmatmul.bf16.gmra.mxu0 %v753
      %v902 = vpop.f32.mrf.mxu0
      %v903 = vadd.f32 %v792, %v902
      %v904 = vpop.f32.mrf.mxu0
      %v905 = vadd.f32 %v793, %v904
      %906 = vmatmul.bf16.gmra.mxu0 %v754
      %v907 = vpop.f32.mrf.mxu0
      %v908 = vadd.f32 %v794, %v907
      %v909 = vpop.f32.mrf.mxu0
      %v910 = vadd.f32 %v795, %v909
      %911 = vmatmul.bf16.gmra.mxu0 %v755
      %v912 = vpop.f32.mrf.mxu0
      %v913 = vadd.f32 %v796, %v912
      %v914 = vpop.f32.mrf.mxu0
      %v915 = vadd.f32 %v797, %v914
      %916 = vmatmul.bf16.gmra.mxu0 %v756
      %v917 = vpop.f32.mrf.mxu0
      %v918 = vadd.f32 %v798, %v917
      %v919 = vpop.f32.mrf.mxu0
      %v920 = vadd.f32 %v799, %v919
      %921 = vmatmul.bf16.gmra.mxu0 %v757
      %v922 = vpop.f32.mrf.mxu0
      %v923 = vadd.f32 %v800, %v922
      %v924 = vpop.f32.mrf.mxu0
      %v925 = vadd.f32 %v801, %v924
      %926 = vmatmul.bf16.gmra.mxu0 %v758
      %v927 = vpop.f32.mrf.mxu0
      %v928 = vadd.f32 %v802, %v927
      %v929 = vpop.f32.mrf.mxu0
      %v930 = vadd.f32 %v803, %v929
      %931 = vmatmul.bf16.gmra.mxu0 %v759
      %v932 = vpop.f32.mrf.mxu0
      %v933 = vadd.f32 %v804, %v932
      %v934 = vpop.f32.mrf.mxu0
      %v935 = vadd.f32 %v805, %v934
      %936 = vmatmul.bf16.gmra.mxu0 %v760
      %v937 = vpop.f32.mrf.mxu0
      %v938 = vadd.f32 %v806, %v937
      %v939 = vpop.f32.mrf.mxu0
      %v940 = vadd.f32 %v807, %v939
      %941 = vmatmul.bf16.gmra.mxu0 %v761
      %v942 = vpop.f32.mrf.mxu0
      %v943 = vadd.f32 %v808, %v942
      %v944 = vpop.f32.mrf.mxu0
      %v945 = vadd.f32 %v809, %v944
      %946 = vdwg.mxu0
      %v947 = vmax.f32 %v868, 0.0
      %v948 = vmax.f32 %v870, 0.0
      %v949 = vmax.f32 %v873, 0.0
      %v950 = vmax.f32 %v875, 0.0
      %v951 = vmax.f32 %v878, 0.0
      %v952 = vmax.f32 %v880, 0.0
      %v953 = vmax.f32 %v883, 0.0
      %v954 = vmax.f32 %v885, 0.0
      %v955 = vmax.f32 %v888, 0.0
      %v956 = vmax.f32 %v890, 0.0
      %v957 = vmax.f32 %v893, 0.0
      %v958 = vmax.f32 %v895, 0.0
      %v959 = vmax.f32 %v898, 0.0
      %v960 = vmax.f32 %v900, 0.0
      %v961 = vmax.f32 %v903, 0.0
      %v962 = vmax.f32 %v905, 0.0
      %v963 = vmax.f32 %v908, 0.0
      %v964 = vmax.f32 %v910, 0.0
      %v965 = vmax.f32 %v913, 0.0
      %v966 = vmax.f32 %v915, 0.0
      %v967 = vmax.f32 %v918, 0.0
      %v968 = vmax.f32 %v920, 0.0
      %v969 = vmax.f32 %v923, 0.0
      %v970 = vmax.f32 %v925, 0.0
      %v971 = vmax.f32 %v928, 0.0
      %v972 = vmax.f32 %v930, 0.0
      %v973 = vmax.f32 %v933, 0.0
      %v974 = vmax.f32 %v935, 0.0
      %v975 = vmax.f32 %v938, 0.0
      %v976 = vmax.f32 %v940, 0.0
      %v977 = vmax.f32 %v943, 0.0
      %v978 = vmax.f32 %v945, 0.0
      %v979 = vpack.c.bf16 %v947, %v947
      %v980 = vpack.c.bf16 %v948, %v948
      %v981 = vpack.c.bf16 %v949, %v949
      %v982 = vpack.c.bf16 %v950, %v950
      %v983 = vpack.c.bf16 %v951, %v951
      %v984 = vpack.c.bf16 %v952, %v952
      %v985 = vpack.c.bf16 %v953, %v953
      %v986 = vpack.c.bf16 %v954, %v954
      %v987 = vpack.c.bf16 %v955, %v955
      %v988 = vpack.c.bf16 %v956, %v956
      %v989 = vpack.c.bf16 %v957, %v957
      %v990 = vpack.c.bf16 %v958, %v958
      %v991 = vpack.c.bf16 %v959, %v959
      %v992 = vpack.c.bf16 %v960, %v960
      %v993 = vpack.c.bf16 %v961, %v961
      %v994 = vpack.c.bf16 %v962, %v962
      %v995 = vpack.c.bf16 %v963, %v963
      %v996 = vpack.c.bf16 %v964, %v964
      %v997 = vpack.c.bf16 %v965, %v965
      %v998 = vpack.c.bf16 %v966, %v966
      %v999 = vpack.c.bf16 %v967, %v967
      %v1000 = vpack.c.bf16 %v968, %v968
      %v1001 = vpack.c.bf16 %v969, %v969
      %v1002 = vpack.c.bf16 %v970, %v970
      %v1003 = vpack.c.bf16 %v971, %v971
      %v1004 = vpack.c.bf16 %v972, %v972
      %v1005 = vpack.c.bf16 %v973, %v973
      %v1006 = vpack.c.bf16 %v974, %v974
      %v1007 = vpack.c.bf16 %v975, %v975
      %v1008 = vpack.c.bf16 %v976, %v976
      %v1009 = vpack.c.bf16 %v977, %v977
      %v1010 = vpack.c.bf16 %v978, %v978
      %1011 = vst [vmem:[#allocation11] sm:$0xf] %v979
      %1012 = vst [vmem:[#allocation11 + $0x4] sm:$0xf] %v980
      %1013 = vst [vmem:[#allocation11 + $0x8] sm:$0xf] %v981
      %1014 = vst [vmem:[#allocation11 + $0xc] sm:$0xf] %v982
      %1015 = vst [vmem:[#allocation11 + $0x10] sm:$0xf] %v983
      %1016 = vst [vmem:[#allocation11 + $0x14] sm:$0xf] %v984
      %1017 = vst [vmem:[#allocation11 + $0x18] sm:$0xf] %v985
      %1018 = vst [vmem:[#allocation11 + $0x1c] sm:$0xf] %v986
      %1019 = vst [vmem:[#allocation11 + $0x20] sm:$0xf] %v987
      %1020 = vst [vmem:[#allocation11 + $0x24] sm:$0xf] %v988
      %1021 = vst [vmem:[#allocation11 + $0x28] sm:$0xf] %v989
      %1022 = vst [vmem:[#allocation11 + $0x2c] sm:$0xf] %v990
      %1023 = vst [vmem:[#allocation11 + $0x30] sm:$0xf] %v991
      %1024 = vst [vmem:[#allocation11 + $0x34] sm:$0xf] %v992
      %1025 = vst [vmem:[#allocation11 + $0x38] sm:$0xf] %v993
      %1026 = vst [vmem:[#allocation11 + $0x3c] sm:$0xf] %v994
      %1027 = vst [vmem:[#allocation11 + $0x40] sm:$0xf] %v995
      %1028 = vst [vmem:[#allocation11 + $0x44] sm:$0xf] %v996
      %1029 = vst [vmem:[#allocation11 + $0x48] sm:$0xf] %v997
      %1030 = vst [vmem:[#allocation11 + $0x4c] sm:$0xf] %v998
      %1031 = vst [vmem:[#allocation11 + $0x50] sm:$0xf] %v999
      %1032 = vst [vmem:[#allocation11 + $0x54] sm:$0xf] %v1000
      %1033 = vst [vmem:[#allocation11 + $0x58] sm:$0xf] %v1001
      %1034 = vst [vmem:[#allocation11 + $0x5c] sm:$0xf] %v1002
      %1035 = vst [vmem:[#allocation11 + $0x60] sm:$0xf] %v1003
      %1036 = vst [vmem:[#allocation11 + $0x64] sm:$0xf] %v1004
      %1037 = vst [vmem:[#allocation11 + $0x68] sm:$0xf] %v1005
      %1038 = vst [vmem:[#allocation11 + $0x6c] sm:$0xf] %v1006
      %1039 = vst [vmem:[#allocation11 + $0x70] sm:$0xf] %v1007
      %1040 = vst [vmem:[#allocation11 + $0x74] sm:$0xf] %v1008
      %1041 = vst [vmem:[#allocation11 + $0x78] sm:$0xf] %v1009
      %1042 = vst [vmem:[#allocation11 + $0x7c] sm:$0xf] %v1010
    $region41: #{tpu_custom_call.1} parent=1 // pred_fallthru
      _
    // Predicated region
    $region42: #{tpu_custom_call.1} parent=1 // pred_check
      _
    $region43: #{tpu_custom_call.1} parent=1 // pred_check_branch
      %1044 = sbr.rel (0) target = $region45
    $region44: #{tpu_custom_call.1} parent=1 // pred_region
      %1046 = vsyncadd [#allocation5], 0
      %s1047 = sshll.u32 [#allocation11], 4
      %s1048 = int_to_ptr.vmem [resolvable:$true] %s1047
      %s1049 = sshll.u32 %s4, 4
      %s1050 = int_to_ptr.hbm [resolvable:$true] %s1049
      %1055 = dma.vmem_to_hbm [thread:$0]  %s1048, 2048, %s1050, [#allocation5], 64, 64, 4
    $region45: #{tpu_custom_call.1} parent=1 // pred_fallthru
      _
    // Predicated region
    $region46: #{tpu_custom_call.1} parent=1 // pred_check
      _
    $region47: #{tpu_custom_call.1} parent=1 // pred_check_branch
      %1057 = sbr.rel (0) target = $region49
    $region48: #{tpu_custom_call.1} parent=1 // pred_region
      %1059 = dma.done [#allocation5], 2048
    $region49: #{tpu_custom_call.1} parent=1 // pred_fallthru
      _
    %1060 = vsyncpa [#allocation4], 1
    %1061 = vsyncpa [#allocation7], 1
    %1062 = vsyncpa [#allocation10], 1
    %1063 = vsyncpa [#allocation5], 1

</llo_original>
